<compile_context>
chip_gen: v5e
topology: v5e:2x2
jax: 0.10.0
libtpu: 0.0.40
codegen_flags: <defaults>
</compile_context>

<pallas_src>
import functools

import jax
import jax.numpy as jnp
from jax.experimental import pallas as pl
from jax.experimental.pallas import tpu as pltpu


# --------------------------------------------------------------------------- #
# Kernel
# --------------------------------------------------------------------------- #
def _mlp_kernel(x_ref,
                w1_ref, b1_ref,
                w2_ref, b2_ref,
                w3_ref, b3_ref,
                w4_ref, b4_ref,
                o_ref):
    wdt = w1_ref.dtype                       # f32, or bf16 on the fast MXU path
    x = x_ref[...].astype(wdt)

    # fc1 + ReLU   (f32 accumulate, f32 elementwise; cast operands for next MXU op)
    h = jnp.dot(x, w1_ref[...], preferred_element_type=jnp.float32) + b1_ref[...]
    h = jnp.maximum(h, 0.0).astype(wdt)

    # fc2 + ReLU
    h = jnp.dot(h, w2_ref[...], preferred_element_type=jnp.float32) + b2_ref[...]
    h = jnp.maximum(h, 0.0).astype(wdt)

    # fc3 + ReLU
    h = jnp.dot(h, w3_ref[...], preferred_element_type=jnp.float32) + b3_ref[...]
    h = jnp.maximum(h, 0.0).astype(wdt)

    # fc4 + Tanh   (output written at true code_dim width -> minimal HBM writeback)
    h = jnp.dot(h, w4_ref[...], preferred_element_type=jnp.float32) + b4_ref[...]
    o_ref[...] = jnp.tanh(h).astype(o_ref.dtype)


# --------------------------------------------------------------------------- #
# Helpers
# --------------------------------------------------------------------------- #
def _round_up(x, m):
    return ((x + m - 1) // m) * m


@functools.lru_cache(maxsize=1)
def _num_tensorcores():
    """2 TensorCores per chip on v7x, else 1 (v5e/v6e). Safe fallback = 1."""
    try:
        kind = jax.devices()[0].device_kind.lower()
    except Exception:
        return 1
    return 2 if ("v7" in kind or "7x" in kind) else 1


def _choose_block_b(B, requested, num_cores):
    """Batch tile: big, multiple of 8, never (much) larger than B.
    On 2-TC chips (v7x) force an even number of grid steps for core balance;
    on 1-TC chips (v5e/v6e) a batch that fits one tile runs in one grid step."""
    bb = min(_round_up(max(requested, 8), 8), _round_up(B, 8))
    if num_cores > 1 and B >= 16 * num_cores:
        steps = -(-B // bb)
        steps = _round_up(max(steps, num_cores), num_cores)   # even #steps on v7x
        bb = _round_up(-(-B // steps), 8)
    return bb


def prepare_params(params, use_bf16=True):
    """One-time prep: cast weights to the MXU operand dtype (bf16 by default),
    keep biases in f32 as (1, out) rows. Call once; reuse across forward calls."""
    wdt = jnp.bfloat16 if use_bf16 else jnp.float32
    prepared = {}
    for idx in range(1, 5):
        prepared[f"w{idx}"] = jnp.asarray(params[f"w{idx}"]).astype(wdt)
        prepared[f"b{idx}"] = (
            jnp.asarray(params[f"b{idx}"]).reshape(1, -1).astype(jnp.float32))
    return prepared


# --------------------------------------------------------------------------- #
# Forward
# --------------------------------------------------------------------------- #
@functools.partial(jax.jit, static_argnames=("block_b",))
def generator_mnist_in_code_forward(samples, prepared, block_b=2048):
    """samples: (B, z_size) float32.  prepared: output of prepare_params()."""
    B, z_size = samples.shape
    d1 = prepared["w1"].shape[1]      # 64
    d2 = prepared["w2"].shape[1]      # 256
    d3 = prepared["w3"].shape[1]      # 256
    code_dim = prepared["w4"].shape[1]

    num_cores = _num_tensorcores()
    bb = _choose_block_b(B, block_b, num_cores)
    grid_b = pl.cdiv(B, bb)           # ragged last tile: reads padded, writes masked

    def full_spec(a):
        # Whole array, constant block index -> stays resident in VMEM across grid.
        return pl.BlockSpec(a.shape, lambda i: (0, 0))

    weight_keys = ("w1", "b1", "w2", "b2", "w3", "b3", "w4", "b4")
    weight_args = [prepared[k] for k in weight_keys]

    flops = 2 * B * (z_size * d1 + d1 * d2 + d2 * d3 + d3 * code_dim)
    bytes_accessed = (
        B * z_size * samples.dtype.itemsize
        + sum(int(a.size) * a.dtype.itemsize for a in weight_args)
        + B * code_dim * samples.dtype.itemsize)

    out = pl.pallas_call(
        _mlp_kernel,
        out_shape=jax.ShapeDtypeStruct((B, code_dim), samples.dtype),
        grid_spec=pltpu.PrefetchScalarGridSpec(
            num_scalar_prefetch=0,
            grid=(grid_b,),
            in_specs=[pl.BlockSpec((bb, z_size), lambda i: (i, 0))]
                     + [full_spec(a) for a in weight_args],
            out_specs=pl.BlockSpec((bb, code_dim), lambda i: (i, 0)),
        ),
        compiler_params=pltpu.CompilerParams(
            dimension_semantics=("parallel",),
            vmem_limit_bytes=48 * 1024 * 1024),
        cost_estimate=pl.CostEstimate(
            flops=flops,
            transcendentals=B * code_dim,
            bytes_accessed=bytes_accessed),
    )(samples, *weight_args)

    return out


# --------------------------------------------------------------------------- #
# Synthetic params + reference
# --------------------------------------------------------------------------- #
def init_params(key, z_size, code_dim):
    """Deterministic synthetic parameters with PyTorch-Linear-like uniform init.
    Weights stored as (in, out) == W_pt.T so y = x @ W + b matches nn.Linear."""
    dims = [(z_size, 64), (64, 256), (256, 256), (256, code_dim)]
    params = {}
    for idx, (fan_in, fan_out) in enumerate(dims, start=1):
        key, kw, kb = jax.random.split(key, 3)
        bound = 1.0 / jnp.sqrt(fan_in)
        params[f"w{idx}"] = jax.random.uniform(
            kw, (fan_in, fan_out), jnp.float32, -bound, bound)
        params[f"b{idx}"] = jax.random.uniform(
            kb, (fan_out,), jnp.float32, -bound, bound)
    return params


def _reference_forward(samples, params):
    h = jnp.maximum(samples @ params["w1"] + params["b1"], 0.0)
    h = jnp.maximum(h @ params["w2"] + params["b2"], 0.0)
    h = jnp.maximum(h @ params["w3"] + params["b3"], 0.0)
    return jnp.tanh(h @ params["w4"] + params["b4"])


if __name__ == "__main__":
    z_size = 16
    code_dim = 32

    key = jax.random.PRNGKey(0)
    key, k_in = jax.random.split(key)
    params = init_params(key, z_size, code_dim)

    prepared_f32 = prepare_params(params, use_bf16=False)   # exactness check path
    prepared_bf16 = prepare_params(params, use_bf16=True)   # default fast path

    # Small batch: tile adapts down to 8, single grid step.
    batch = 8
    samples = jax.random.normal(k_in, (batch, z_size), jnp.float32)
    out = jax.block_until_ready(
        generator_mnist_in_code_forward(samples, prepared_f32))
    ref = _reference_forward(samples, params)
    assert out.shape == (batch, code_dim)
    assert jnp.allclose(out, ref, atol=1e-5, rtol=1e-5), "f32 small-batch mismatch"

    # Ragged larger batch: exercises cdiv grid + masked partial last tile.
    batch2 = 300
    key, k2 = jax.random.split(key)
    samples2 = jax.random.normal(k2, (batch2, z_size), jnp.float32)
    out2 = jax.block_until_ready(
        generator_mnist_in_code_forward(samples2, prepared_f32, block_b=128))
    ref2 = _reference_forward(samples2, params)
    assert out2.shape == (batch2, code_dim)
    assert jnp.allclose(out2, ref2, atol=1e-5, rtol=1e-5), "f32 ragged-batch mismatch"

    # Default bf16 MXU-operand path (f32 accumulate); loose tolerance.
    out_bf = jax.block_until_ready(
        generator_mnist_in_code_forward(samples2, prepared_bf16, block_b=128))
    assert out_bf.shape == (batch2, code_dim)
    assert jnp.allclose(out_bf, ref2, atol=5e-2, rtol=5e-2), "bf16 path mismatch"

    print("KERNEL_OK")
</pallas_src>

<mosaic_0001>
module attributes {stable_mosaic.version = 11 : i64} {
  func.func @_mlp_kernel(%arg0: i32, %arg1: memref<8x16xf32, #tpu.memory_space<vmem>>, %arg2: memref<16x64xf32, #tpu.memory_space<vmem>>, %arg3: memref<1x64xf32, #tpu.memory_space<vmem>>, %arg4: memref<64x256xf32, #tpu.memory_space<vmem>>, %arg5: memref<1x256xf32, #tpu.memory_space<vmem>>, %arg6: memref<256x256xf32, #tpu.memory_space<vmem>>, %arg7: memref<1x256xf32, #tpu.memory_space<vmem>>, %arg8: memref<256x32xf32, #tpu.memory_space<vmem>>, %arg9: memref<1x32xf32, #tpu.memory_space<vmem>>, %arg10: memref<8x32xf32, #tpu.memory_space<vmem>>) attributes {dimension_semantics = [#tpu.dimension_semantics<parallel>], iteration_bounds = array<i64: 1>, scalar_prefetch = 0 : i64, scratch_operands = 0 : i64, tpu.core_type = #tpu.core_type<tc>, window_params = [{transform_indices = @transform_0, window_bounds = array<i64: 8, 16>}, {pipeline_mode = #tpu.pipeline_mode<synchronous>, transform_indices = @transform_1, window_bounds = array<i64: 16, 64>}, {pipeline_mode = #tpu.pipeline_mode<synchronous>, transform_indices = @transform_2, window_bounds = array<i64: 1, 64>}, {pipeline_mode = #tpu.pipeline_mode<synchronous>, transform_indices = @transform_3, window_bounds = array<i64: 64, 256>}, {pipeline_mode = #tpu.pipeline_mode<synchronous>, transform_indices = @transform_4, window_bounds = array<i64: 1, 256>}, {pipeline_mode = #tpu.pipeline_mode<synchronous>, transform_indices = @transform_5, window_bounds = array<i64: 256, 256>}, {pipeline_mode = #tpu.pipeline_mode<synchronous>, transform_indices = @transform_6, window_bounds = array<i64: 1, 256>}, {pipeline_mode = #tpu.pipeline_mode<synchronous>, transform_indices = @transform_7, window_bounds = array<i64: 256, 32>}, {pipeline_mode = #tpu.pipeline_mode<synchronous>, transform_indices = @transform_8, window_bounds = array<i64: 1, 32>}, {transform_indices = @transform_9, window_bounds = array<i64: 8, 32>}]} {
    %c0 = arith.constant 0 : index
    %c0_0 = arith.constant 0 : index
    %0 = vector.load %arg1[%c0, %c0_0] : memref<8x16xf32, #tpu.memory_space<vmem>>, vector<8x16xf32>
    %c0_1 = arith.constant 0 : index
    %c0_2 = arith.constant 0 : index
    %1 = vector.load %arg2[%c0_1, %c0_2] : memref<16x64xf32, #tpu.memory_space<vmem>>, vector<16x64xf32>
    %cst = arith.constant dense<0.000000e+00> : vector<8x64xf32>
    %2 = tpu.matmul %0, %1, %cst {dimension_numbers = #tpu.dot_dimension_numbers<[1], [0], [0], [1], [0, 0, 1, 1], [], []>} : vector<8x16xf32>, vector<16x64xf32>, vector<8x64xf32> -> vector<8x64xf32>
    %c0_3 = arith.constant 0 : index
    %c0_4 = arith.constant 0 : index
    %3 = vector.load %arg3[%c0_3, %c0_4] : memref<1x64xf32, #tpu.memory_space<vmem>>, vector<1x64xf32>
    %4 = vector.broadcast %3 : vector<1x64xf32> to vector<8x64xf32>
    %5 = arith.addf %2, %4 : vector<8x64xf32>
    %cst_5 = arith.constant 0.000000e+00 : f32
    %6 = vector.broadcast %cst_5 : f32 to vector<8x64xf32>
    %7 = arith.maximumf %5, %6 : vector<8x64xf32>
    %c0_6 = arith.constant 0 : index
    %c0_7 = arith.constant 0 : index
    %8 = vector.load %arg4[%c0_6, %c0_7] : memref<64x256xf32, #tpu.memory_space<vmem>>, vector<64x256xf32>
    %cst_8 = arith.constant dense<0.000000e+00> : vector<8x256xf32>
    %9 = tpu.matmul %7, %8, %cst_8 {dimension_numbers = #tpu.dot_dimension_numbers<[1], [0], [0], [1], [0, 0, 1, 1], [], []>} : vector<8x64xf32>, vector<64x256xf32>, vector<8x256xf32> -> vector<8x256xf32>
    %c0_9 = arith.constant 0 : index
    %c0_10 = arith.constant 0 : index
    %10 = vector.load %arg5[%c0_9, %c0_10] : memref<1x256xf32, #tpu.memory_space<vmem>>, vector<1x256xf32>
    %11 = vector.broadcast %10 : vector<1x256xf32> to vector<8x256xf32>
    %12 = arith.addf %9, %11 : vector<8x256xf32>
    %cst_11 = arith.constant 0.000000e+00 : f32
    %13 = vector.broadcast %cst_11 : f32 to vector<8x256xf32>
    %14 = arith.maximumf %12, %13 : vector<8x256xf32>
    %c0_12 = arith.constant 0 : index
    %c0_13 = arith.constant 0 : index
    %15 = vector.load %arg6[%c0_12, %c0_13] : memref<256x256xf32, #tpu.memory_space<vmem>>, vector<256x256xf32>
    %cst_14 = arith.constant dense<0.000000e+00> : vector<8x256xf32>
    %16 = tpu.matmul %14, %15, %cst_14 {dimension_numbers = #tpu.dot_dimension_numbers<[1], [0], [0], [1], [0, 0, 1, 1], [], []>} : vector<8x256xf32>, vector<256x256xf32>, vector<8x256xf32> -> vector<8x256xf32>
    %c0_15 = arith.constant 0 : index
    %c0_16 = arith.constant 0 : index
    %17 = vector.load %arg7[%c0_15, %c0_16] : memref<1x256xf32, #tpu.memory_space<vmem>>, vector<1x256xf32>
    %18 = vector.broadcast %17 : vector<1x256xf32> to vector<8x256xf32>
    %19 = arith.addf %16, %18 : vector<8x256xf32>
    %cst_17 = arith.constant 0.000000e+00 : f32
    %20 = vector.broadcast %cst_17 : f32 to vector<8x256xf32>
    %21 = arith.maximumf %19, %20 : vector<8x256xf32>
    %c0_18 = arith.constant 0 : index
    %c0_19 = arith.constant 0 : index
    %22 = vector.load %arg8[%c0_18, %c0_19] : memref<256x32xf32, #tpu.memory_space<vmem>>, vector<256x32xf32>
    %cst_20 = arith.constant dense<0.000000e+00> : vector<8x32xf32>
    %23 = tpu.matmul %21, %22, %cst_20 {dimension_numbers = #tpu.dot_dimension_numbers<[1], [0], [0], [1], [0, 0, 1, 1], [], []>} : vector<8x256xf32>, vector<256x32xf32>, vector<8x32xf32> -> vector<8x32xf32>
    %c0_21 = arith.constant 0 : index
    %c0_22 = arith.constant 0 : index
    %24 = vector.load %arg9[%c0_21, %c0_22] : memref<1x32xf32, #tpu.memory_space<vmem>>, vector<1x32xf32>
    %25 = vector.broadcast %24 : vector<1x32xf32> to vector<8x32xf32>
    %26 = arith.addf %23, %25 : vector<8x32xf32>
    %27 = math.tanh %26 : vector<8x32xf32>
    %c0_23 = arith.constant 0 : index
    %c0_24 = arith.constant 0 : index
    %28 = vector.load %arg10[%c0_23, %c0_24] : memref<8x32xf32, #tpu.memory_space<vmem>>, vector<8x32xf32>
    tpu.vector_store %arg10[%c0_23, %c0_24], %27 {strides = array<i32>} : memref<8x32xf32, #tpu.memory_space<vmem>>, vector<8x32xf32>,
    return
  }
  func.func @transform_0(%arg0: i32) -> (i32, i32) {
    %c0_i32 = arith.constant 0 : i32
    %c0_i32_0 = arith.constant 0 : i32
    return %arg0, %c0_i32 : i32, i32
  }
  func.func @transform_1(%arg0: i32) -> (i32, i32) {
    %c0_i32 = arith.constant 0 : i32
    %c0_i32_0 = arith.constant 0 : i32
    %c0_i32_1 = arith.constant 0 : i32
    return %c0_i32, %c0_i32_0 : i32, i32
  }
  func.func @transform_2(%arg0: i32) -> (i32, i32) {
    %c0_i32 = arith.constant 0 : i32
    %c0_i32_0 = arith.constant 0 : i32
    %c0_i32_1 = arith.constant 0 : i32
    return %c0_i32, %c0_i32_0 : i32, i32
  }
  func.func @transform_3(%arg0: i32) -> (i32, i32) {
    %c0_i32 = arith.constant 0 : i32
    %c0_i32_0 = arith.constant 0 : i32
    %c0_i32_1 = arith.constant 0 : i32
    return %c0_i32, %c0_i32_0 : i32, i32
  }
  func.func @transform_4(%arg0: i32) -> (i32, i32) {
    %c0_i32 = arith.constant 0 : i32
    %c0_i32_0 = arith.constant 0 : i32
    %c0_i32_1 = arith.constant 0 : i32
    return %c0_i32, %c0_i32_0 : i32, i32
  }
  func.func @transform_5(%arg0: i32) -> (i32, i32) {
    %c0_i32 = arith.constant 0 : i32
    %c0_i32_0 = arith.constant 0 : i32
    %c0_i32_1 = arith.constant 0 : i32
    return %c0_i32, %c0_i32_0 : i32, i32
  }
  func.func @transform_6(%arg0: i32) -> (i32, i32) {
    %c0_i32 = arith.constant 0 : i32
    %c0_i32_0 = arith.constant 0 : i32
    %c0_i32_1 = arith.constant 0 : i32
    return %c0_i32, %c0_i32_0 : i32, i32
  }
  func.func @transform_7(%arg0: i32) -> (i32, i32) {
    %c0_i32 = arith.constant 0 : i32
    %c0_i32_0 = arith.constant 0 : i32
    %c0_i32_1 = arith.constant 0 : i32
    return %c0_i32, %c0_i32_0 : i32, i32
  }
  func.func @transform_8(%arg0: i32) -> (i32, i32) {
    %c0_i32 = arith.constant 0 : i32
    %c0_i32_0 = arith.constant 0 : i32
    %c0_i32_1 = arith.constant 0 : i32
    return %c0_i32, %c0_i32_0 : i32, i32
  }
  func.func @transform_9(%arg0: i32) -> (i32, i32) {
    %c0_i32 = arith.constant 0 : i32
    %c0_i32_0 = arith.constant 0 : i32
    return %arg0, %c0_i32 : i32, i32
  }
}

</mosaic_0001>

<llo_original>
// kernel: generator_mnist_in_code_forward.1
$region0: #{generator_mnist_in_code_forward.1}
  #allocation0 [shape = 'u32[]', space=smem, size = 0x4, offset = 0x4, fixed_abs, tag = 'smem constant byte address 0x4 - core index']
  #allocation1 [shape = 'u32[72,128]{1,0:T(1,128)}', space=vmem, size = 0x9000, scoped, tag = 'internal scratch']
  %s0 = inlined_call_operand.vmem [shape: f32[8,16], index: 0, kind: input, shape index: {}]
  %s1 = inlined_call_operand.vmem [shape: f32[16,64], index: 1, kind: input, shape index: {}]
  %s2 = inlined_call_operand.vmem [shape: f32[1,64], index: 2, kind: input, shape index: {}]
  %s3 = inlined_call_operand.vmem [shape: f32[64,256], index: 3, kind: input, shape index: {}]
  %s4 = inlined_call_operand.vmem [shape: f32[1,256], index: 4, kind: input, shape index: {}]
  %s5 = inlined_call_operand.hbm [shape: f32[256,256], index: 5, kind: input, shape index: {}]
  %s6 = inlined_call_operand.vmem [shape: f32[1,256], index: 6, kind: input, shape index: {}]
  %s7 = inlined_call_operand.vmem [shape: f32[256,32], index: 7, kind: input, shape index: {}]
  %s8 = inlined_call_operand.vmem [shape: f32[1,32], index: 8, kind: input, shape index: {}]
  %s9 = inlined_call_operand.hbm [shape: f32[8,32], index: 9, kind: output, shape index: {}]
  %s10 = sld [smem:[#allocation0]]
  $region50: #{generator_mnist_in_code_forward.1} parent=0
    _
  %s12 = ssub.s32 1, %s10
  %s13 = scalar_select 0, %s12, %s10
  $region1: #{generator_mnist_in_code_forward.1} parent=0
    #allocation2 [shape = 'u8[262144]{0}', space=vmem, size = 0x40000, scoped, tag = 'input window, operand 5, single buffered']
    #allocation3 [shape = 's32[1]{0}', space=sflag, size = 0x4, scoped, tag = 'scoped memory for generator_mnist_in_code_forward.1']
    #allocation4 [shape = 's32[1]{0}', space=sflag, size = 0x4, scoped, tag = 'scoped memory for generator_mnist_in_code_forward.1']
    #allocation5 [shape = 'u8[4096]{0}', space=vmem, size = 0x1000, scoped, tag = 'output window, operand 0, single buffered']
    %14 = vsyncpa [#allocation3], 0
    %15 = vsyncpa [#allocation4], 0
    // Predicated region
    $region2: #{generator_mnist_in_code_forward.1} parent=1 // pred_check
      _
    $region3: #{generator_mnist_in_code_forward.1} parent=1 // pred_check_branch
      %17 = sbr.rel (0) target = $region5
    $region4: #{generator_mnist_in_code_forward.1} parent=1 // pred_region
      _
    $region5: #{generator_mnist_in_code_forward.1} parent=1 // pred_fallthru
      _
    // Predicated region
    $region6: #{generator_mnist_in_code_forward.1} parent=1 // pred_check
      _
    $region7: #{generator_mnist_in_code_forward.1} parent=1 // pred_check_branch
      %19 = sbr.rel (0) target = $region9
    $region8: #{generator_mnist_in_code_forward.1} parent=1 // pred_region
      _
    $region9: #{generator_mnist_in_code_forward.1} parent=1 // pred_fallthru
      _
    // Predicated region
    $region10: #{generator_mnist_in_code_forward.1} parent=1 // pred_check
      _
    $region11: #{generator_mnist_in_code_forward.1} parent=1 // pred_check_branch
      %21 = sbr.rel (0) target = $region13
    $region12: #{generator_mnist_in_code_forward.1} parent=1 // pred_region
      _
    $region13: #{generator_mnist_in_code_forward.1} parent=1 // pred_fallthru
      _
    // Predicated region
    $region14: #{generator_mnist_in_code_forward.1} parent=1 // pred_check
      _
    $region15: #{generator_mnist_in_code_forward.1} parent=1 // pred_check_branch
      %23 = sbr.rel (0) target = $region17
    $region16: #{generator_mnist_in_code_forward.1} parent=1 // pred_region
      _
    $region17: #{generator_mnist_in_code_forward.1} parent=1 // pred_fallthru
      _
    // Predicated region
    $region18: #{generator_mnist_in_code_forward.1} parent=1 // pred_check
      _
    $region19: #{generator_mnist_in_code_forward.1} parent=1 // pred_check_branch
      %25 = sbr.rel (0) target = $region21
    $region20: #{generator_mnist_in_code_forward.1} parent=1 // pred_region
      _
    $region21: #{generator_mnist_in_code_forward.1} parent=1 // pred_fallthru
      _
    // Predicated region
    $region22: #{generator_mnist_in_code_forward.1} parent=1 // pred_check
      _
    $region23: #{generator_mnist_in_code_forward.1} parent=1 // pred_check_branch
      %27 = sbr.rel (0) target = $region25
    $region24: #{generator_mnist_in_code_forward.1} parent=1 // pred_region
      %29 = vsyncadd [#allocation3], 0
      %s30 = sshll.u32 %s5, 4
      %s31 = int_to_ptr.hbm [resolvable:$true] %s30
      %s32 = sshll.u32 [#allocation2], 4
      %s33 = int_to_ptr.vmem [resolvable:$true] %s32
      %38 = dma.hbm_to_vmem [thread:$0]  %s31, 8192, %s33, [#allocation3], 256, 256, 16
    $region25: #{generator_mnist_in_code_forward.1} parent=1 // pred_fallthru
      _
    // Predicated region
    $region26: #{generator_mnist_in_code_forward.1} parent=1 // pred_check
      _
    $region27: #{generator_mnist_in_code_forward.1} parent=1 // pred_check_branch
      %40 = sbr.rel (0) target = $region29
    $region28: #{generator_mnist_in_code_forward.1} parent=1 // pred_region
      _
    $region29: #{generator_mnist_in_code_forward.1} parent=1 // pred_fallthru
      _
    // Predicated region
    $region30: #{generator_mnist_in_code_forward.1} parent=1 // pred_check
      _
    $region31: #{generator_mnist_in_code_forward.1} parent=1 // pred_check_branch
      %42 = sbr.rel (0) target = $region33
    $region32: #{generator_mnist_in_code_forward.1} parent=1 // pred_region
      _
    $region33: #{generator_mnist_in_code_forward.1} parent=1 // pred_fallthru
      _
    // Predicated region
    $region34: #{generator_mnist_in_code_forward.1} parent=1 // pred_check
      _
    $region35: #{generator_mnist_in_code_forward.1} parent=1 // pred_check_branch
      %44 = sbr.rel (0) target = $region37
    $region36: #{generator_mnist_in_code_forward.1} parent=1 // pred_region
      _
    $region37: #{generator_mnist_in_code_forward.1} parent=1 // pred_fallthru
      _
    // Predicated region
    $region38: #{generator_mnist_in_code_forward.1} parent=1 // pred_check
      _
    $region39: #{generator_mnist_in_code_forward.1} parent=1 // pred_check_branch
      %46 = sbr.rel (0) target = $region41
    $region40: #{generator_mnist_in_code_forward.1} parent=1 // pred_region
      %48 = dma.done [#allocation3], 8192
    $region41: #{generator_mnist_in_code_forward.1} parent=1 // pred_fallthru
      _
    %v49 = vld [vmem:[%s0] sm:$0xff]
    %v50 = vld [vmem:[%s1] sm:$0xff]
    %v51 = vld [vmem:[%s1 + $0x8] sm:$0xff]
    %v52 = vld [vmem:[%s2] sm:$0x1]
    %v54 = vperm.slane %v52, 0
    %vm56 = vcmask 130048
    %v58 = vsel %vm56, %v49, 0
    %60 = vmatpush.msra.mxu0 0.0
    %61 = vmatpush.msra.mxu0 0.0
    %62 = vmatpush.msra.mxu0 0.0
    %63 = vmatpush.msra.mxu0 0.0
    %64 = vmatpush.msra.mxu0 0.0
    %65 = vmatpush.msra.mxu0 0.0
    %66 = vmatpush.msra.mxu0 0.0
    %67 = vmatpush.msra.mxu0 0.0
    %68 = vmatpush.msra.mxu0 0.0
    %69 = vmatpush.msra.mxu0 0.0
    %70 = vmatpush.msra.mxu0 0.0
    %71 = vmatpush.msra.mxu0 0.0
    %72 = vmatpush.msra.mxu0 0.0
    %73 = vmatpush.msra.mxu0 0.0
    %74 = vmatpush.msra.mxu0 %v51
    %75 = vmatpush.msra.mxu0 %v50
    %76 = vmatmul.f32.gmra.mxu0 %v58
    %v77 = vpop.f32.mrf.mxu0
    %v78 = vadd.f32 %v54, %v77
    %79 = vdwg.mxu0
    %v80 = vmax.f32 %v78, 0.0
    %v81 = vld [vmem:[%s3] sm:$0xff]
    %v82 = vld [vmem:[%s3 + $0x8] sm:$0xff]
    %v83 = vld [vmem:[%s3 + $0x10] sm:$0xff]
    %v84 = vld [vmem:[%s3 + $0x18] sm:$0xff]
    %v85 = vld [vmem:[%s3 + $0x20] sm:$0xff]
    %v86 = vld [vmem:[%s3 + $0x28] sm:$0xff]
    %v87 = vld [vmem:[%s3 + $0x30] sm:$0xff]
    %v88 = vld [vmem:[%s3 + $0x38] sm:$0xff]
    %v89 = vld [vmem:[%s3 + $0x40] sm:$0xff]
    %v90 = vld [vmem:[%s3 + $0x48] sm:$0xff]
    %v91 = vld [vmem:[%s3 + $0x50] sm:$0xff]
    %v92 = vld [vmem:[%s3 + $0x58] sm:$0xff]
    %v93 = vld [vmem:[%s3 + $0x60] sm:$0xff]
    %v94 = vld [vmem:[%s3 + $0x68] sm:$0xff]
    %v95 = vld [vmem:[%s3 + $0x70] sm:$0xff]
    %v96 = vld [vmem:[%s3 + $0x78] sm:$0xff]
    %v97 = vld [vmem:[%s4] sm:$0x3]
    %v99 = vperm.slane %v97, 0
    %v100 = vperm.slane %v97, 1
    %vm103 = vcmask 523264
    %v105 = vsel %vm103, %v80, 0
    %107 = vmatpush.msra.mxu0 0.0
    %108 = vmatpush.msra.mxu0 0.0
    %109 = vmatpush.msra.mxu0 0.0
    %110 = vmatpush.msra.mxu0 0.0
    %111 = vmatpush.msra.mxu0 0.0
    %112 = vmatpush.msra.mxu0 0.0
    %113 = vmatpush.msra.mxu0 0.0
    %114 = vmatpush.msra.mxu0 0.0
    %115 = vmatpush.msra.mxu0 %v95
    %116 = vmatpush.msra.mxu0 %v93
    %117 = vmatpush.msra.mxu0 %v91
    %118 = vmatpush.msra.mxu0 %v89
    %119 = vmatpush.msra.mxu0 %v87
    %120 = vmatpush.msra.mxu0 %v85
    %121 = vmatpush.msra.mxu0 %v83
    %122 = vmatpush.msra.mxu0 %v81
    %123 = vmatmul.f32.gmra.mxu0 %v105
    %v124 = vpop.f32.mrf.mxu0
    %v125 = vadd.f32 %v99, %v124
    %126 = vdwg.mxu0
    %127 = vmatpush.msra.mxu0 0.0
    %128 = vmatpush.msra.mxu0 0.0
    %129 = vmatpush.msra.mxu0 0.0
    %130 = vmatpush.msra.mxu0 0.0
    %131 = vmatpush.msra.mxu0 0.0
    %132 = vmatpush.msra.mxu0 0.0
    %133 = vmatpush.msra.mxu0 0.0
    %134 = vmatpush.msra.mxu0 0.0
    %135 = vmatpush.msra.mxu0 %v96
    %136 = vmatpush.msra.mxu0 %v94
    %137 = vmatpush.msra.mxu0 %v92
    %138 = vmatpush.msra.mxu0 %v90
    %139 = vmatpush.msra.mxu0 %v88
    %140 = vmatpush.msra.mxu0 %v86
    %141 = vmatpush.msra.mxu0 %v84
    %142 = vmatpush.msra.mxu0 %v82
    %143 = vmatmul.f32.gmra.mxu0 %v105
    %v144 = vpop.f32.mrf.mxu0
    %v145 = vadd.f32 %v100, %v144
    %146 = vdwg.mxu0
    %v147 = vmax.f32 %v125, 0.0
    %v148 = vmax.f32 %v145, 0.0
    %v149 = vld [vmem:[#allocation2] sm:$0xff]
    %v150 = vld [vmem:[#allocation2 + $0x8] sm:$0xff]
    %v151 = vld [vmem:[#allocation2 + $0x10] sm:$0xff]
    %v152 = vld [vmem:[#allocation2 + $0x18] sm:$0xff]
    %v153 = vld [vmem:[#allocation2 + $0x20] sm:$0xff]
    %v154 = vld [vmem:[#allocation2 + $0x28] sm:$0xff]
    %v155 = vld [vmem:[#allocation2 + $0x30] sm:$0xff]
    %v156 = vld [vmem:[#allocation2 + $0x38] sm:$0xff]
    %v157 = vld [vmem:[#allocation2 + $0x40] sm:$0xff]
    %v158 = vld [vmem:[#allocation2 + $0x48] sm:$0xff]
    %v159 = vld [vmem:[#allocation2 + $0x50] sm:$0xff]
    %v160 = vld [vmem:[#allocation2 + $0x58] sm:$0xff]
    %v161 = vld [vmem:[#allocation2 + $0x60] sm:$0xff]
    %v162 = vld [vmem:[#allocation2 + $0x68] sm:$0xff]
    %v163 = vld [vmem:[#allocation2 + $0x70] sm:$0xff]
    %v164 = vld [vmem:[#allocation2 + $0x78] sm:$0xff]
    %v165 = vld [vmem:[#allocation2 + $0x80] sm:$0xff]
    %v166 = vld [vmem:[#allocation2 + $0x88] sm:$0xff]
    %v167 = vld [vmem:[#allocation2 + $0x90] sm:$0xff]
    %v168 = vld [vmem:[#allocation2 + $0x98] sm:$0xff]
    %v169 = vld [vmem:[#allocation2 + $0xa0] sm:$0xff]
    %v170 = vld [vmem:[#allocation2 + $0xa8] sm:$0xff]
    %v171 = vld [vmem:[#allocation2 + $0xb0] sm:$0xff]
    %v172 = vld [vmem:[#allocation2 + $0xb8] sm:$0xff]
    %v173 = vld [vmem:[#allocation2 + $0xc0] sm:$0xff]
    %v174 = vld [vmem:[#allocation2 + $0xc8] sm:$0xff]
    %v175 = vld [vmem:[#allocation2 + $0xd0] sm:$0xff]
    %v176 = vld [vmem:[#allocation2 + $0xd8] sm:$0xff]
    %v177 = vld [vmem:[#allocation2 + $0xe0] sm:$0xff]
    %v178 = vld [vmem:[#allocation2 + $0xe8] sm:$0xff]
    %v179 = vld [vmem:[#allocation2 + $0xf0] sm:$0xff]
    %v180 = vld [vmem:[#allocation2 + $0xf8] sm:$0xff]
    %v181 = vld [vmem:[#allocation2 + $0x100] sm:$0xff]
    %v182 = vld [vmem:[#allocation2 + $0x108] sm:$0xff]
    %v183 = vld [vmem:[#allocation2 + $0x110] sm:$0xff]
    %v184 = vld [vmem:[#allocation2 + $0x118] sm:$0xff]
    %v185 = vld [vmem:[#allocation2 + $0x120] sm:$0xff]
    %v186 = vld [vmem:[#allocation2 + $0x128] sm:$0xff]
    %v187 = vld [vmem:[#allocation2 + $0x130] sm:$0xff]
    %v188 = vld [vmem:[#allocation2 + $0x138] sm:$0xff]
    %v189 = vld [vmem:[#allocation2 + $0x140] sm:$0xff]
    %v190 = vld [vmem:[#allocation2 + $0x148] sm:$0xff]
    %v191 = vld [vmem:[#allocation2 + $0x150] sm:$0xff]
    %v192 = vld [vmem:[#allocation2 + $0x158] sm:$0xff]
    %v193 = vld [vmem:[#allocation2 + $0x160] sm:$0xff]
    %v194 = vld [vmem:[#allocation2 + $0x168] sm:$0xff]
    %v195 = vld [vmem:[#allocation2 + $0x170] sm:$0xff]
    %v196 = vld [vmem:[#allocation2 + $0x178] sm:$0xff]
    %v197 = vld [vmem:[#allocation2 + $0x180] sm:$0xff]
    %v198 = vld [vmem:[#allocation2 + $0x188] sm:$0xff]
    %v199 = vld [vmem:[#allocation2 + $0x190] sm:$0xff]
    %v200 = vld [vmem:[#allocation2 + $0x198] sm:$0xff]
    %v201 = vld [vmem:[#allocation2 + $0x1a0] sm:$0xff]
    %v202 = vld [vmem:[#allocation2 + $0x1a8] sm:$0xff]
    %v203 = vld [vmem:[#allocation2 + $0x1b0] sm:$0xff]
    %v204 = vld [vmem:[#allocation2 + $0x1b8] sm:$0xff]
    %v205 = vld [vmem:[#allocation2 + $0x1c0] sm:$0xff]
    %v206 = vld [vmem:[#allocation2 + $0x1c8] sm:$0xff]
    %v207 = vld [vmem:[#allocation2 + $0x1d0] sm:$0xff]
    %v208 = vld [vmem:[#allocation2 + $0x1d8] sm:$0xff]
    %v209 = vld [vmem:[#allocation2 + $0x1e0] sm:$0xff]
    %v210 = vld [vmem:[#allocation2 + $0x1e8] sm:$0xff]
    %v211 = vld [vmem:[#allocation2 + $0x1f0] sm:$0xff]
    %v212 = vld [vmem:[#allocation2 + $0x1f8] sm:$0xff]
    %v213 = vld [vmem:[%s6] sm:$0x3]
    %v215 = vperm.slane %v213, 0
    %v216 = vperm.slane %v213, 1
    %219 = vmatpush.msra.mxu0 %v179
    %220 = vmatpush.msra.mxu0 %v177
    %221 = vmatpush.msra.mxu0 %v175
    %222 = vmatpush.msra.mxu0 %v173
    %223 = vmatpush.msra.mxu0 %v171
    %224 = vmatpush.msra.mxu0 %v169
    %225 = vmatpush.msra.mxu0 %v167
    %226 = vmatpush.msra.mxu0 %v165
    %227 = vmatpush.msra.mxu0 %v163
    %228 = vmatpush.msra.mxu0 %v161
    %229 = vmatpush.msra.mxu0 %v159
    %230 = vmatpush.msra.mxu0 %v157
    %231 = vmatpush.msra.mxu0 %v155
    %232 = vmatpush.msra.mxu0 %v153
    %233 = vmatpush.msra.mxu0 %v151
    %234 = vmatpush.msra.mxu0 %v149
    %235 = vmatmul.f32.gmra.mxu0 %v147
    %v236 = vpop.f32.mrf.mxu0
    %v237 = vadd.f32 %v215, %v236
    %238 = vdwg.mxu0
    %239 = vmatpush.msra.mxu0 %v211
    %240 = vmatpush.msra.mxu0 %v209
    %241 = vmatpush.msra.mxu0 %v207
    %242 = vmatpush.msra.mxu0 %v205
    %243 = vmatpush.msra.mxu0 %v203
    %244 = vmatpush.msra.mxu0 %v201
    %245 = vmatpush.msra.mxu0 %v199
    %246 = vmatpush.msra.mxu0 %v197
    %247 = vmatpush.msra.mxu0 %v195
    %248 = vmatpush.msra.mxu0 %v193
    %249 = vmatpush.msra.mxu0 %v191
    %250 = vmatpush.msra.mxu0 %v189
    %251 = vmatpush.msra.mxu0 %v187
    %252 = vmatpush.msra.mxu0 %v185
    %253 = vmatpush.msra.mxu0 %v183
    %254 = vmatpush.msra.mxu0 %v181
    %255 = vmatmul.f32.gmra.mxu0 %v148
    %v256 = vpop.f32.mrf.mxu0
    %v257 = vadd.f32 %v237, %v256
    %258 = vdwg.mxu0
    %259 = vmatpush.msra.mxu0 %v180
    %260 = vmatpush.msra.mxu0 %v178
    %261 = vmatpush.msra.mxu0 %v176
    %262 = vmatpush.msra.mxu0 %v174
    %263 = vmatpush.msra.mxu0 %v172
    %264 = vmatpush.msra.mxu0 %v170
    %265 = vmatpush.msra.mxu0 %v168
    %266 = vmatpush.msra.mxu0 %v166
    %267 = vmatpush.msra.mxu0 %v164
    %268 = vmatpush.msra.mxu0 %v162
    %269 = vmatpush.msra.mxu0 %v160
    %270 = vmatpush.msra.mxu0 %v158
    %271 = vmatpush.msra.mxu0 %v156
    %272 = vmatpush.msra.mxu0 %v154
    %273 = vmatpush.msra.mxu0 %v152
    %274 = vmatpush.msra.mxu0 %v150
    %275 = vmatmul.f32.gmra.mxu0 %v147
    %v276 = vpop.f32.mrf.mxu0
    %v277 = vadd.f32 %v216, %v276
    %278 = vdwg.mxu0
    %279 = vmatpush.msra.mxu0 %v212
    %280 = vmatpush.msra.mxu0 %v210
    %281 = vmatpush.msra.mxu0 %v208
    %282 = vmatpush.msra.mxu0 %v206
    %283 = vmatpush.msra.mxu0 %v204
    %284 = vmatpush.msra.mxu0 %v202
    %285 = vmatpush.msra.mxu0 %v200
    %286 = vmatpush.msra.mxu0 %v198
    %287 = vmatpush.msra.mxu0 %v196
    %288 = vmatpush.msra.mxu0 %v194
    %289 = vmatpush.msra.mxu0 %v192
    %290 = vmatpush.msra.mxu0 %v190
    %291 = vmatpush.msra.mxu0 %v188
    %292 = vmatpush.msra.mxu0 %v186
    %293 = vmatpush.msra.mxu0 %v184
    %294 = vmatpush.msra.mxu0 %v182
    %295 = vmatmul.f32.gmra.mxu0 %v148
    %v296 = vpop.f32.mrf.mxu0
    %v297 = vadd.f32 %v277, %v296
    %298 = vdwg.mxu0
    %v299 = vmax.f32 %v257, 0.0
    %v300 = vmax.f32 %v297, 0.0
    %v301 = vld [vmem:[%s7] sm:$0xff]
    %v302 = vld [vmem:[%s7 + $0x8] sm:$0xff]
    %v303 = vld [vmem:[%s7 + $0x10] sm:$0xff]
    %v304 = vld [vmem:[%s7 + $0x18] sm:$0xff]
    %v305 = vld [vmem:[%s7 + $0x20] sm:$0xff]
    %v306 = vld [vmem:[%s7 + $0x28] sm:$0xff]
    %v307 = vld [vmem:[%s7 + $0x30] sm:$0xff]
    %v308 = vld [vmem:[%s7 + $0x38] sm:$0xff]
    %v309 = vld [vmem:[%s7 + $0x40] sm:$0xff]
    %v310 = vld [vmem:[%s7 + $0x48] sm:$0xff]
    %v311 = vld [vmem:[%s7 + $0x50] sm:$0xff]
    %v312 = vld [vmem:[%s7 + $0x58] sm:$0xff]
    %v313 = vld [vmem:[%s7 + $0x60] sm:$0xff]
    %v314 = vld [vmem:[%s7 + $0x68] sm:$0xff]
    %v315 = vld [vmem:[%s7 + $0x70] sm:$0xff]
    %v316 = vld [vmem:[%s7 + $0x78] sm:$0xff]
    %v317 = vld [vmem:[%s7 + $0x80] sm:$0xff]
    %v318 = vld [vmem:[%s7 + $0x88] sm:$0xff]
    %v319 = vld [vmem:[%s7 + $0x90] sm:$0xff]
    %v320 = vld [vmem:[%s7 + $0x98] sm:$0xff]
    %v321 = vld [vmem:[%s7 + $0xa0] sm:$0xff]
    %v322 = vld [vmem:[%s7 + $0xa8] sm:$0xff]
    %v323 = vld [vmem:[%s7 + $0xb0] sm:$0xff]
    %v324 = vld [vmem:[%s7 + $0xb8] sm:$0xff]
    %v325 = vld [vmem:[%s7 + $0xc0] sm:$0xff]
    %v326 = vld [vmem:[%s7 + $0xc8] sm:$0xff]
    %v327 = vld [vmem:[%s7 + $0xd0] sm:$0xff]
    %v328 = vld [vmem:[%s7 + $0xd8] sm:$0xff]
    %v329 = vld [vmem:[%s7 + $0xe0] sm:$0xff]
    %v330 = vld [vmem:[%s7 + $0xe8] sm:$0xff]
    %v331 = vld [vmem:[%s7 + $0xf0] sm:$0xff]
    %v332 = vld [vmem:[%s7 + $0xf8] sm:$0xff]
    %v333 = vld [vmem:[%s8] sm:$0x1]
    %v335 = vperm.slane %v333, 0
    %337 = vmatpush.msra.mxu0 %v316
    %338 = vmatpush.msra.mxu0 %v315
    %339 = vmatpush.msra.mxu0 %v314
    %340 = vmatpush.msra.mxu0 %v313
    %341 = vmatpush.msra.mxu0 %v312
    %342 = vmatpush.msra.mxu0 %v311
    %343 = vmatpush.msra.mxu0 %v310
    %344 = vmatpush.msra.mxu0 %v309
    %345 = vmatpush.msra.mxu0 %v308
    %346 = vmatpush.msra.mxu0 %v307
    %347 = vmatpush.msra.mxu0 %v306
    %348 = vmatpush.msra.mxu0 %v305
    %349 = vmatpush.msra.mxu0 %v304
    %350 = vmatpush.msra.mxu0 %v303
    %351 = vmatpush.msra.mxu0 %v302
    %352 = vmatpush.msra.mxu0 %v301
    %353 = vmatmul.f32.gmra.mxu0 %v299
    %v354 = vpop.f32.mrf.mxu0
    %v355 = vadd.f32 %v335, %v354
    %356 = vdwg.mxu0
    %357 = vmatpush.msra.mxu0 %v332
    %358 = vmatpush.msra.mxu0 %v331
    %359 = vmatpush.msra.mxu0 %v330
    %360 = vmatpush.msra.mxu0 %v329
    %361 = vmatpush.msra.mxu0 %v328
    %362 = vmatpush.msra.mxu0 %v327
    %363 = vmatpush.msra.mxu0 %v326
    %364 = vmatpush.msra.mxu0 %v325
    %365 = vmatpush.msra.mxu0 %v324
    %366 = vmatpush.msra.mxu0 %v323
    %367 = vmatpush.msra.mxu0 %v322
    %368 = vmatpush.msra.mxu0 %v321
    %369 = vmatpush.msra.mxu0 %v320
    %370 = vmatpush.msra.mxu0 %v319
    %371 = vmatpush.msra.mxu0 %v318
    %372 = vmatpush.msra.mxu0 %v317
    %373 = vmatmul.f32.gmra.mxu0 %v300
    %v374 = vpop.f32.mrf.mxu0
    %v375 = vadd.f32 %v355, %v374
    %376 = vdwg.mxu0
    %v377 = vtanh.pop %v375
    %vm378 = vcmask 261120
    %379 = vst.msk [vmem:[#allocation5] sm:$0xff] %vm378, %v377
    // Predicated region
    $region42: #{generator_mnist_in_code_forward.1} parent=1 // pred_check
      _
    $region43: #{generator_mnist_in_code_forward.1} parent=1 // pred_check_branch
      %381 = sbr.rel (0) target = $region45
    $region44: #{generator_mnist_in_code_forward.1} parent=1 // pred_region
      %383 = vsyncadd [#allocation4], 0
      %s385 = sshll.u32 [#allocation5], 4
      %s386 = int_to_ptr.vmem [resolvable:$true] %s385
      %s387 = sshll.u32 %s9, 4
      %s388 = int_to_ptr.hbm [resolvable:$true] %s387
      %390 = dma.vmem_to_hbm [thread:$0]  %s386, 128, %s388, [#allocation4]
    $region45: #{generator_mnist_in_code_forward.1} parent=1 // pred_fallthru
      _
    // Predicated region
    $region46: #{generator_mnist_in_code_forward.1} parent=1 // pred_check
      _
    $region47: #{generator_mnist_in_code_forward.1} parent=1 // pred_check_branch
      %392 = sbr.rel (0) target = $region49
    $region48: #{generator_mnist_in_code_forward.1} parent=1 // pred_region
      %394 = dma.done [#allocation4], 128
    $region49: #{generator_mnist_in_code_forward.1} parent=1 // pred_fallthru
      _
    %395 = vsyncpa [#allocation3], 1
    %396 = vsyncpa [#allocation4], 1

</llo_original>
